<compile_context>
chip_gen: v7x
topology: tpu7x:2x2x1
jax: 0.10.0
libtpu: 0.0.40
codegen_flags: <defaults>
</compile_context>

<pallas_src>
import jax
import jax.numpy as jnp
from jax.experimental import pallas as pl
from jax.experimental.pallas import tpu as pltpu


def _round_up(x, m):
    return ((x + m - 1) // m) * m


def _pick_tile(dim, grain, max_tile, prefer_multi_block=False):
    """Largest multiple of `grain` that divides `dim` and is <= max_tile.
    If prefer_multi_block, prefer tiles that leave >= 2 blocks (megacore sharding)."""
    assert dim % grain == 0
    best, best_multi = grain, None
    t = grain
    cap = min(max_tile, dim)
    while t <= cap:
        if dim % t == 0:
            best = t
            if dim // t >= 2:
                best_multi = t
        t += grain
    return best_multi if (prefer_multi_block and best_multi is not None) else best


def _vmem_limit_bytes(working_set):
    """Generation-aware VMEM limit: headroom over the working set, clamped to 75% of
    the chip's VMEM capacity (128 MiB on v5e/v6e, 64 MiB per TC on v7x)."""
    cap = 64 * 1024 * 1024
    try:
        cap = int(pltpu.get_tpu_info().vmem_capacity_bytes)
    except Exception:
        pass
    limit = max(int(1.5 * working_set) + (4 << 20), 16 << 20)
    return int(min(limit, int(0.75 * cap)))


# ---------------------------------------------------------------------------
# Linear kernel: h = X @ W with W fully VMEM-resident.
# Single reduction step -> no accumulator scratch, no init/finalize pl.when.
# ---------------------------------------------------------------------------
def _linear_kernel(x_ref, w_ref, o_ref):
    o_ref[...] = jnp.dot(
        x_ref[...], w_ref[...], preferred_element_type=jnp.float32
    ).astype(o_ref.dtype)


def pallas_linear(x, w, *, out_dtype=jnp.bfloat16, tm_max=512):
    M, K = x.shape
    K2, N = w.shape
    assert K == K2
    Mp, Kp, Np = _round_up(M, 16), _round_up(K, 128), _round_up(N, 128)
    x_p = x if (Mp, Kp) == (M, K) else jnp.pad(x, ((0, Mp - M), (0, Kp - K)))
    w_p = w if (Kp, Np) == (K, N) else jnp.pad(w, ((0, Kp - K), (0, Np - N)))
    tm = _pick_tile(Mp, 16, tm_max, prefer_multi_block=True)

    itm = jnp.dtype(x.dtype).itemsize
    out_itm = jnp.dtype(out_dtype).itemsize
    working = 2 * tm * Kp * itm + Kp * Np * itm + 2 * tm * Np * out_itm

    out_p = pl.pallas_call(
        _linear_kernel,
        out_shape=jax.ShapeDtypeStruct((Mp, Np), out_dtype),
        grid_spec=pltpu.PrefetchScalarGridSpec(
            num_scalar_prefetch=0,
            grid=(Mp // tm,),
            in_specs=[
                pl.BlockSpec((tm, Kp), lambda i: (i, 0)),
                pl.BlockSpec((Kp, Np), lambda i: (0, 0)),   # W resident
            ],
            out_specs=pl.BlockSpec((tm, Np), lambda i: (i, 0)),
        ),
        compiler_params=pltpu.CompilerParams(
            dimension_semantics=("parallel",),
            vmem_limit_bytes=_vmem_limit_bytes(working),
        ),
        cost_estimate=pl.CostEstimate(
            flops=2 * M * K * N,
            transcendentals=0,
            bytes_accessed=(M * K + K * N) * itm + M * N * out_itm,
        ),
    )(x_p, w_p)
    return out_p[:M, :N] if (Mp, Np) != (M, N) else out_p


# ---------------------------------------------------------------------------
# Fused aggregation kernel:
#   out = (adj @ feat) [@ W] + bias
# adj is streamed in (tm, tk) tiles over the K (node) axis with an f32
# accumulator; feat / W / bias stay VMEM-resident; bias + projection happen in
# the last-K epilogue so the intermediate never round-trips HBM.
# ---------------------------------------------------------------------------
def _make_fused_kernel(tk, with_proj, feat_resident):
    def kernel(*refs):
        if with_proj:
            adj_ref, feat_ref, w_ref, bias_ref, o_ref, acc_ref = refs
        else:
            adj_ref, feat_ref, bias_ref, o_ref, acc_ref = refs

        k = pl.program_id(1)

        @pl.when(k == 0)
        def _init():
            acc_ref[...] = jnp.zeros_like(acc_ref)

        if feat_resident:
            start = pl.multiple_of(k * tk, tk)
            feat_blk = feat_ref[pl.ds(start, tk), :]
        else:
            feat_blk = feat_ref[...]

        acc_ref[...] += jnp.dot(
            adj_ref[...], feat_blk, preferred_element_type=jnp.float32
        )

        @pl.when(k == pl.num_programs(1) - 1)
        def _epilogue():
            acc = acc_ref[...]
            if with_proj:
                out = jnp.dot(
                    acc.astype(w_ref.dtype), w_ref[...],
                    preferred_element_type=jnp.float32,
                )
            else:
                out = acc
            o_ref[...] = (out + bias_ref[...]).astype(o_ref.dtype)

    return kernel


def pallas_aggregate(adj, feat, *, weight=None, bias=None, out_dtype=jnp.float32,
                     tm_max=256, tk_max=2048, feat_resident_limit=16 << 20):
    M, K = adj.shape
    Kf, F = feat.shape
    assert K == Kf
    if weight is not None:
        assert weight.shape[0] == F
        Dout = weight.shape[1]
    else:
        Dout = F

    Mp = _round_up(M, 16)
    Kp = _round_up(K, 128)
    Fp = _round_up(F, 128)
    Nop = _round_up(Dout, 128)

    adj_p = adj if adj.shape == (Mp, Kp) else jnp.pad(adj, ((0, Mp - M), (0, Kp - K)))
    feat_p = feat if feat.shape == (Kp, Fp) else jnp.pad(feat, ((0, Kp - Kf), (0, Fp - F)))

    bias_full = jnp.zeros((Dout,), jnp.float32) if bias is None else bias.astype(jnp.float32)
    bias_p = jnp.pad(bias_full, (0, Nop - Dout)).reshape(1, Nop)

    tm = _pick_tile(Mp, 16, tm_max, prefer_multi_block=True)
    tk = _pick_tile(Kp, 128, tk_max)

    adj_itm = jnp.dtype(adj.dtype).itemsize
    feat_itm = jnp.dtype(feat.dtype).itemsize
    out_itm = jnp.dtype(out_dtype).itemsize

    feat_resident = (Kp * Fp * feat_itm) <= feat_resident_limit
    with_proj = weight is not None
    acc_cols = Fp if with_proj else Nop
    if not with_proj:
        assert Fp == Nop  # feat already carries the output feature width

    kernel = _make_fused_kernel(tk, with_proj, feat_resident)

    in_specs = [pl.BlockSpec((tm, tk), lambda i, k: (i, k))]
    operands = [adj_p]
    if feat_resident:
        in_specs.append(pl.BlockSpec((Kp, Fp), lambda i, k: (0, 0)))   # feat resident
        feat_bytes = Kp * Fp * feat_itm
    else:
        in_specs.append(pl.BlockSpec((tk, Fp), lambda i, k: (k, 0)))   # stream feat
        feat_bytes = 2 * tk * Fp * feat_itm
    operands.append(feat_p)

    w_bytes = 0
    if with_proj:
        w_p = weight if weight.shape == (Fp, Nop) else jnp.pad(
            weight, ((0, Fp - weight.shape[0]), (0, Nop - weight.shape[1])))
        in_specs.append(pl.BlockSpec((Fp, Nop), lambda i, k: (0, 0)))  # W resident
        operands.append(w_p)
        w_bytes = Fp * Nop * jnp.dtype(weight.dtype).itemsize

    in_specs.append(pl.BlockSpec((1, Nop), lambda i, k: (0, 0)))       # bias resident
    operands.append(bias_p)

    working = (2 * tm * tk * adj_itm + feat_bytes + w_bytes + Nop * 4
               + 2 * tm * Nop * out_itm + tm * acc_cols * 4)

    flops = 2 * M * K * F + (2 * M * F * Dout if with_proj else 0)
    bytes_acc = (M * K + K * F) * adj_itm + M * Dout * out_itm

    out_p = pl.pallas_call(
        kernel,
        out_shape=jax.ShapeDtypeStruct((Mp, Nop), out_dtype),
        grid_spec=pltpu.PrefetchScalarGridSpec(
            num_scalar_prefetch=0,
            grid=(Mp // tm, Kp // tk),
            in_specs=in_specs,
            out_specs=pl.BlockSpec((tm, Nop), lambda i, k: (i, 0)),
            scratch_shapes=[pltpu.VMEM((tm, acc_cols), jnp.float32)],
        ),
        compiler_params=pltpu.CompilerParams(
            dimension_semantics=("parallel", "arbitrary"),
            vmem_limit_bytes=_vmem_limit_bytes(working),
        ),
        cost_estimate=pl.CostEstimate(
            flops=flops, transcendentals=0, bytes_accessed=bytes_acc),
    )(*operands)

    return out_p[:M, :Dout] if (Mp, Nop) != (M, Dout) else out_p


# ---------------------------------------------------------------------------
# Normalized message operator from edge_index (scatter-free, f32 normalization).
# ---------------------------------------------------------------------------
def build_message_matrix(edge_index, num_nodes, *, normalize=True, dtype=jnp.float32):
    """A_hat[i, j] = normalized weight of message j -> i (GCN-style).

    Matches GeneralConvLayer.norm with unit edge weights: every node ends up with
    exactly one weight-1 self loop (add_remaining_self_loops, fill_value=1); degree
    is the sum over the source index; norm_e = d^-1/2[src] * d^-1/2[dst].
    Built with one-hot matmuls (MXU-friendly) instead of a serialized XLA scatter.
    """
    # TODO(synk): for large graphs replace this dense O(N^2) operator with a sparse
    # scalar-prefetch aggregation kernel (edges sorted by dst, SMEM row offsets).
    src = edge_index[0]
    dst = edge_index[1]
    src_oh = jax.nn.one_hot(src, num_nodes, dtype=jnp.float32)   # [E, N]
    dst_oh = jax.nn.one_hot(dst, num_nodes, dtype=jnp.float32)   # [E, N]
    if normalize:
        keep = (src != dst).astype(jnp.float32)[:, None]         # drop existing self loops
        adj = dst_oh.T @ (src_oh * keep)
        adj = adj + jnp.eye(num_nodes, dtype=jnp.float32)        # one weight-1 loop per node
        deg = jnp.sum(adj, axis=0)                               # degree over source index (f32)
        dis = jnp.where(deg > 0.0, jax.lax.rsqrt(deg), 0.0)
        adj = dis[:, None] * adj * dis[None, :]
    else:
        adj = dst_oh.T @ src_oh
    return adj.astype(dtype)


# ---------------------------------------------------------------------------
# GeneralConv.forward: batch.x = GeneralConvLayer(batch.x, batch.edge_index)
# ---------------------------------------------------------------------------
def general_conv_forward(batch, weight, bias=None, *, normalize_adj=True):
    x = batch["x"]
    edge_index = batch["edge_index"]
    num_nodes, dim_in = x.shape
    dim_out = weight.shape[1]

    # bf16 MXU operands, f32 accumulation inside the kernels.
    x_bf = x.astype(jnp.bfloat16)
    w_bf = weight.astype(jnp.bfloat16)
    adj = build_message_matrix(edge_index, num_nodes,
                               normalize=normalize_adj, dtype=jnp.bfloat16)

    if dim_in <= dim_out:
        # Fully fused (A_hat @ X) @ W + b in one pallas_call: the N x dim_in
        # intermediate lives only in the VMEM accumulator.
        out = pallas_aggregate(adj, x_bf, weight=w_bf, bias=bias, out_dtype=x.dtype)
    else:
        # dim_in > dim_out: project first (narrower N^2 matmul), then aggregate
        # with the bias folded into the kernel epilogue.
        h = pallas_linear(x_bf, w_bf, out_dtype=jnp.bfloat16)
        out = pallas_aggregate(adj, h, weight=None, bias=bias, out_dtype=x.dtype)

    new_batch = dict(batch)
    new_batch["x"] = out
    return new_batch


if __name__ == "__main__":
    def reference(x, weight, bias, edge_index, num_nodes, aggregate_first):
        # bf16-operand / f32-accumulate reference mirroring the kernel math.
        adj = build_message_matrix(edge_index, num_nodes,
                                   dtype=jnp.bfloat16).astype(jnp.float32)
        xb = x.astype(jnp.bfloat16).astype(jnp.float32)
        wb = weight.astype(jnp.bfloat16).astype(jnp.float32)
        hp = jax.lax.Precision.HIGHEST
        if aggregate_first:
            h = jnp.matmul(adj, xb, precision=hp).astype(jnp.bfloat16).astype(jnp.float32)
            out = jnp.matmul(h, wb, precision=hp)
        else:
            h = jnp.matmul(xb, wb, precision=hp).astype(jnp.bfloat16).astype(jnp.float32)
            out = jnp.matmul(adj, h, precision=hp)
        if bias is not None:
            out = out + bias[None, :]
        return out

    key = jax.random.PRNGKey(0)
    k1, k2, k3, k4, k5, k6, k7 = jax.random.split(key, 7)

    # Case 1: dim_in < dim_out, no bias -> fully fused (A_hat @ X) @ W path.
    N, D_IN, D_OUT, E = 64, 32, 64, 256
    x = jax.random.normal(k1, (N, D_IN), dtype=jnp.float32)
    weight = jax.random.normal(k2, (D_IN, D_OUT), dtype=jnp.float32) / jnp.sqrt(D_IN)
    edge_index = jax.random.randint(k3, (2, E), 0, N, dtype=jnp.int32)

    out1 = general_conv_forward({"x": x, "edge_index": edge_index}, weight)["x"]
    out1 = jax.block_until_ready(out1)
    ref1 = reference(x, weight, None, edge_index, N, aggregate_first=True)
    assert out1.shape == (N, D_OUT), f"bad output shape {out1.shape}"
    assert jnp.allclose(out1, ref1, atol=3e-2, rtol=3e-2), \
        f"case1 mismatch, max err {jnp.max(jnp.abs(out1 - ref1))}"

    # Case 2: dim_in > dim_out, with bias -> project-then-aggregate path.
    N2, D_IN2, D_OUT2, E2 = 48, 64, 32, 128
    x2 = jax.random.normal(k4, (N2, D_IN2), dtype=jnp.float32)
    weight2 = jax.random.normal(k5, (D_IN2, D_OUT2), dtype=jnp.float32) / jnp.sqrt(D_IN2)
    bias2 = 0.1 * jax.random.normal(k6, (D_OUT2,), dtype=jnp.float32)
    edge_index2 = jax.random.randint(k7, (2, E2), 0, N2, dtype=jnp.int32)

    out2 = general_conv_forward({"x": x2, "edge_index": edge_index2}, weight2, bias2)["x"]
    out2 = jax.block_until_ready(out2)
    ref2 = reference(x2, weight2, bias2, edge_index2, N2, aggregate_first=False)
    assert out2.shape == (N2, D_OUT2), f"bad output shape {out2.shape}"
    assert jnp.allclose(out2, ref2, atol=3e-2, rtol=3e-2), \
        f"case2 mismatch, max err {jnp.max(jnp.abs(out2 - ref2))}"

    print("KERNEL_OK")
</pallas_src>

<mosaic_0001>
module attributes {stable_mosaic.version = 11 : i64} {
  func.func @kernel(%arg0: i32, %arg1: i32, %arg2: memref<32x128xbf16, #tpu.memory_space<vmem>>, %arg3: memref<128x128xbf16, #tpu.memory_space<vmem>>, %arg4: memref<128x128xbf16, #tpu.memory_space<vmem>>, %arg5: memref<1x128xf32, #tpu.memory_space<vmem>>, %arg6: memref<32x128xf32, #tpu.memory_space<vmem>>, %arg7: memref<32x128xf32, #tpu.memory_space<vmem>>) attributes {dimension_semantics = [#tpu.dimension_semantics<parallel>, #tpu.dimension_semantics<arbitrary>], iteration_bounds = array<i64: 2, 1>, scalar_prefetch = 0 : i64, scratch_operands = 1 : i64, tpu.core_type = #tpu.core_type<tc>, window_params = [{transform_indices = @transform_0, window_bounds = array<i64: 32, 128>}, {pipeline_mode = #tpu.pipeline_mode<synchronous>, transform_indices = @transform_1, window_bounds = array<i64: 128, 128>}, {pipeline_mode = #tpu.pipeline_mode<synchronous>, transform_indices = @transform_2, window_bounds = array<i64: 128, 128>}, {pipeline_mode = #tpu.pipeline_mode<synchronous>, transform_indices = @transform_3, window_bounds = array<i64: 1, 128>}, {transform_indices = @transform_4, window_bounds = array<i64: 32, 128>}]} {
    %c0_i32 = arith.constant 0 : i32
    %0 = arith.cmpi eq, %arg1, %c0_i32 : i32
    %1 = arith.extui %0 : i1 to i32
    %c0_i32_0 = arith.constant 0 : i32
    %2 = arith.cmpi ne, %1, %c0_i32_0 : i32
    scf.if %2 {
      %cst_9 = arith.constant 0.000000e+00 : f32
      %15 = vector.broadcast %cst_9 : f32 to vector<32x128xf32>
      %c0_10 = arith.constant 0 : index
      %c0_11 = arith.constant 0 : index
      %16 = vector.load %arg7[%c0_10, %c0_11] : memref<32x128xf32, #tpu.memory_space<vmem>>, vector<32x128xf32>
      tpu.vector_store %arg7[%c0_10, %c0_11], %15 {strides = array<i32>} : memref<32x128xf32, #tpu.memory_space<vmem>>, vector<32x128xf32>,
    } else {
    }
    %c128_i32 = arith.constant 128 : i32
    %3 = arith.muli %arg1, %c128_i32 : i32
    %4 = tpu.assume_multiple %3, 128 : i32
    %5 = arith.index_cast %4 : i32 to index
    %c0 = arith.constant 0 : index
    %6 = vector.load %arg3[%5, %c0] : memref<128x128xbf16, #tpu.memory_space<vmem>>, vector<128x128xbf16>
    %c0_1 = arith.constant 0 : index
    %c0_2 = arith.constant 0 : index
    %7 = vector.load %arg7[%c0_1, %c0_2] : memref<32x128xf32, #tpu.memory_space<vmem>>, vector<32x128xf32>
    %c0_3 = arith.constant 0 : index
    %c0_4 = arith.constant 0 : index
    %8 = vector.load %arg2[%c0_3, %c0_4] : memref<32x128xbf16, #tpu.memory_space<vmem>>, vector<32x128xbf16>
    %cst = arith.constant dense<0.000000e+00> : vector<32x128xf32>
    %9 = tpu.matmul %8, %6, %cst {dimension_numbers = #tpu.dot_dimension_numbers<[1], [0], [0], [1], [0, 0, 1, 1], [], []>} : vector<32x128xbf16>, vector<128x128xbf16>, vector<32x128xf32> -> vector<32x128xf32>
    %10 = arith.addf %7, %9 : vector<32x128xf32>
    %c0_5 = arith.constant 0 : index
    %c0_6 = arith.constant 0 : index
    %11 = vector.load %arg7[%c0_5, %c0_6] : memref<32x128xf32, #tpu.memory_space<vmem>>, vector<32x128xf32>
    tpu.vector_store %arg7[%c0_5, %c0_6], %10 {strides = array<i32>} : memref<32x128xf32, #tpu.memory_space<vmem>>, vector<32x128xf32>,
    %c0_i32_7 = arith.constant 0 : i32
    %12 = arith.cmpi eq, %arg1, %c0_i32_7 : i32
    %13 = arith.extui %12 : i1 to i32
    %c0_i32_8 = arith.constant 0 : i32
    %14 = arith.cmpi ne, %13, %c0_i32_8 : i32
    scf.if %14 {
      %c0_9 = arith.constant 0 : index
      %c0_10 = arith.constant 0 : index
      %15 = vector.load %arg7[%c0_9, %c0_10] : memref<32x128xf32, #tpu.memory_space<vmem>>, vector<32x128xf32>
      %16 = arith.truncf %15 : vector<32x128xf32> to vector<32x128xbf16>
      %c0_11 = arith.constant 0 : index
      %c0_12 = arith.constant 0 : index
      %17 = vector.load %arg4[%c0_11, %c0_12] : memref<128x128xbf16, #tpu.memory_space<vmem>>, vector<128x128xbf16>
      %cst_13 = arith.constant dense<0.000000e+00> : vector<32x128xf32>
      %18 = tpu.matmul %16, %17, %cst_13 {dimension_numbers = #tpu.dot_dimension_numbers<[1], [0], [0], [1], [0, 0, 1, 1], [], []>} : vector<32x128xbf16>, vector<128x128xbf16>, vector<32x128xf32> -> vector<32x128xf32>
      %c0_14 = arith.constant 0 : index
      %c0_15 = arith.constant 0 : index
      %19 = vector.load %arg5[%c0_14, %c0_15] : memref<1x128xf32, #tpu.memory_space<vmem>>, vector<1x128xf32>
      %20 = vector.broadcast %19 : vector<1x128xf32> to vector<32x128xf32>
      %21 = arith.addf %18, %20 : vector<32x128xf32>
      %c0_16 = arith.constant 0 : index
      %c0_17 = arith.constant 0 : index
      %22 = vector.load %arg6[%c0_16, %c0_17] : memref<32x128xf32, #tpu.memory_space<vmem>>, vector<32x128xf32>
      tpu.vector_store %arg6[%c0_16, %c0_17], %21 {strides = array<i32>} : memref<32x128xf32, #tpu.memory_space<vmem>>, vector<32x128xf32>,
    } else {
    }
    return
  }
  func.func @transform_0(%arg0: i32, %arg1: i32) -> (i32, i32) {
    %c0_i32 = arith.constant 0 : i32
    return %arg0, %arg1 : i32, i32
  }
  func.func @transform_1(%arg0: i32, %arg1: i32) -> (i32, i32) {
    %c0_i32 = arith.constant 0 : i32
    %c0_i32_0 = arith.constant 0 : i32
    %c0_i32_1 = arith.constant 0 : i32
    return %c0_i32, %c0_i32_0 : i32, i32
  }
  func.func @transform_2(%arg0: i32, %arg1: i32) -> (i32, i32) {
    %c0_i32 = arith.constant 0 : i32
    %c0_i32_0 = arith.constant 0 : i32
    %c0_i32_1 = arith.constant 0 : i32
    return %c0_i32, %c0_i32_0 : i32, i32
  }
  func.func @transform_3(%arg0: i32, %arg1: i32) -> (i32, i32) {
    %c0_i32 = arith.constant 0 : i32
    %c0_i32_0 = arith.constant 0 : i32
    %c0_i32_1 = arith.constant 0 : i32
    return %c0_i32, %c0_i32_0 : i32, i32
  }
  func.func @transform_4(%arg0: i32, %arg1: i32) -> (i32, i32) {
    %c0_i32 = arith.constant 0 : i32
    %c0_i32_0 = arith.constant 0 : i32
    return %arg0, %c0_i32 : i32, i32
  }
}

</mosaic_0001>

<llo_original>
// kernel: tpu_custom_call.1
$region0: #{tpu_custom_call.1}
  #allocation0 [shape = 'u32[]', space=smem, size = 0x4, offset = 0x4, fixed_abs, tag = 'smem constant byte address 0x4 - core index']
  #allocation1 [shape = 'u32[144,128]{1,0:T(1,128)}', space=vmem, size = 0x12000, scoped, tag = 'internal scratch']
  #allocation2 [shape = 'f32[32,128]{1,0:T(8,128)}', space=vmem, size = 0x4000, scoped, tag = 'scratch operand']
  %s0 = inlined_call_operand.hbm [shape: bf16[64,128], index: 0, kind: input, shape index: {}]
  %s1 = inlined_call_operand.hbm [shape: bf16[128,128], index: 1, kind: input, shape index: {}]
  %s2 = inlined_call_operand.hbm [shape: bf16[128,128], index: 2, kind: input, shape index: {}]
  %s3 = inlined_call_operand.vmem [shape: f32[1,128], index: 3, kind: input, shape index: {}]
  %s4 = inlined_call_operand.hbm [shape: f32[64,128], index: 4, kind: output, shape index: {}]
  %s5 = sld [smem:[#allocation0]]
  $region69: #{tpu_custom_call.1} parent=0
    _
  %s7 = ssub.s32 1, %s5
  %s8 = scalar_select 0, %s7, %s5
  $region1: #{tpu_custom_call.1} parent=0
    #allocation3 [shape = 'u8[16384]{0}', space=vmem, size = 0x4000, scoped, tag = 'input window, operand 0']
    #allocation4 [shape = 's32[2]{0}', space=sflag, size = 0x8, scoped, tag = 'scoped memory for tpu_custom_call.1']
    #allocation5 [shape = 's32[2]{0}', space=sflag, size = 0x8, scoped, tag = 'scoped memory for tpu_custom_call.1']
    #allocation6 [shape = 'u8[32768]{0}', space=vmem, size = 0x8000, scoped, tag = 'input window, operand 1, single buffered']
    #allocation7 [shape = 's32[1]{0}', space=sflag, size = 0x4, scoped, tag = 'scoped memory for tpu_custom_call.1']
    #allocation8 [shape = 'u8[32768]{0}', space=vmem, size = 0x8000, scoped, tag = 'input window, operand 2, single buffered']
    #allocation9 [shape = 'u8[32768]{0}', space=vmem, size = 0x8000, scoped, tag = 'output window, operand 0']
    %9 = vsyncpa [#allocation4], 0
    %s10 = scalar_lea.sflag [#allocation4], 1
    %11 = vsyncpa %s10, 0
    %12 = vsyncpa [#allocation7], 0
    %13 = vsyncpa [#allocation5], 0
    %s14 = scalar_lea.sflag [#allocation5], 1
    %15 = vsyncpa %s14, 0
    loop: start=0, step=1, limit=4
    $region2: #{tpu_custom_call.1} parent=1 // loop_pre_header
      _
    $region3: #{tpu_custom_call.1} parent=1 // loop_header
      %s17 = sphi 0, %s21
      %p18 = scmp.ge.s32.totalorder %s17, 4
      %s24 = sphi 0, %s36
      %s25 = sphi 0, %s32
      %s26 = sphi 0, %s24
      %s27 = sphi 0, %s25
      %s28 = sphi 0, %s26
      %s29 = sphi 0, %s27
      %s41 = sphi 0, %s43
      %s44 = sphi 0, %s41
      %s45 = sphi 0, %s44
      %s61 = sphi 0, %s45
      %s65 = sphi 0, %s65
      %s67 = sphi 0, %s65
      %s68 = sphi 0, %s67
      %s82 = sphi 0, %s68
      %s86 = sphi 0, %s86
      %s88 = sphi 0, %s86
      %s89 = sphi 0, %s88
      %s103 = sphi 0, %s89
      %s107 = sphi 0, %s107
      %s109 = sphi 0, %s107
      %s110 = sphi 0, %s109
      %s124 = sphi 0, %s110
      %s130 = sphi 0, %s132
      %s133 = sphi 0, %s130
      %s134 = sphi 0, %s133
      %s150 = sphi 0, %s134
    $region4: #{tpu_custom_call.1} parent=1 // loop_header_branch
      %20 = sbr.rel (%p18) target = $region8
    $region5: #{tpu_custom_call.1} parent=1 // loop_body
      %s22 = ssub.s32 %s17, 1
      %s23 = ssub.s32 %s17, 2
      %s30 = sadd.s32 1, %s25
      %p31 = scmp.ge.s32.totalorder %s30, 1
      %s32 = scalar_select %p31, 0, %s30
      %s33 = sadd.s32 1, %s24
      %s34 = scalar_select %p31, %s33, %s24
      %p35 = scmp.ge.s32.totalorder %s34, 2
      %s36 = scalar_select %p35, 0, %s34
      %s37 = ssub.s32 %s24, %s36
      %s38 = ssub.s32 %s25, %s32
      %s39 = sor.u32 %s37, %s38
      %p40 = scmp.eq.s32.totalorder %s39, 0
      %s42 = sadd.s32 %s41, 1
      %s43 = scalar_select %p40, %s41, %s42
      %p46 = pneg %p40
      %p47 = scmp.eq.s32.totalorder %s17, 1
      %p48 = por %p46, %p47
      %p49 = scmp.ne.s32.totalorder %s41, %s44
      %p50 = scmp.eq.s32.totalorder %s17, 0
      %p51 = por %p49, %p50
      %p52 = scmp.ne.s32.totalorder %s41, %s44
      %p53 = scmp.eq.s32.totalorder %s22, 1
      %p54 = por %p52, %p53
      %p55 = scmp.ne.s32.totalorder %s44, %s45
      %p56 = scmp.eq.s32.totalorder %s22, 0
      %p57 = por %p55, %p56
      %p58 = scmp.ne.s32.totalorder %s44, %s45
      %p59 = scmp.eq.s32.totalorder %s23, 1
      %p60 = por %p58, %p59
      %p62 = scmp.ne.s32.totalorder %s45, %s61
      %p63 = scmp.eq.s32.totalorder %s23, 0
      %p64 = por %p62, %p63
      %s66 = sadd.s32 %s65, 1
      %p69 = scmp.eq.s32.totalorder %s17, 1
      %p70 = scmp.ne.s32.totalorder %s65, %s67
      %p71 = scmp.eq.s32.totalorder %s17, 0
      %p72 = por %p70, %p71
      %p73 = scmp.ne.s32.totalorder %s65, %s67
      %p74 = scmp.eq.s32.totalorder %s22, 1
      %p75 = por %p73, %p74
      %p76 = scmp.ne.s32.totalorder %s67, %s68
      %p77 = scmp.eq.s32.totalorder %s22, 0
      %p78 = por %p76, %p77
      %p79 = scmp.ne.s32.totalorder %s67, %s68
      %p80 = scmp.eq.s32.totalorder %s23, 1
      %p81 = por %p79, %p80
      %p83 = scmp.ne.s32.totalorder %s68, %s82
      %p84 = scmp.eq.s32.totalorder %s23, 0
      %p85 = por %p83, %p84
      %s87 = sadd.s32 %s86, 1
      %p90 = scmp.eq.s32.totalorder %s17, 1
      %p91 = scmp.ne.s32.totalorder %s86, %s88
      %p92 = scmp.eq.s32.totalorder %s17, 0
      %p93 = por %p91, %p92
      %p94 = scmp.ne.s32.totalorder %s86, %s88
      %p95 = scmp.eq.s32.totalorder %s22, 1
      %p96 = por %p94, %p95
      %p97 = scmp.ne.s32.totalorder %s88, %s89
      %p98 = scmp.eq.s32.totalorder %s22, 0
      %p99 = por %p97, %p98
      %p100 = scmp.ne.s32.totalorder %s88, %s89
      %p101 = scmp.eq.s32.totalorder %s23, 1
      %p102 = por %p100, %p101
      %p104 = scmp.ne.s32.totalorder %s89, %s103
      %p105 = scmp.eq.s32.totalorder %s23, 0
      %p106 = por %p104, %p105
      %s108 = sadd.s32 %s107, 1
      %p111 = scmp.eq.s32.totalorder %s17, 1
      %p112 = scmp.ne.s32.totalorder %s107, %s109
      %p113 = scmp.eq.s32.totalorder %s17, 0
      %p114 = por %p112, %p113
      %p115 = scmp.ne.s32.totalorder %s107, %s109
      %p116 = scmp.eq.s32.totalorder %s22, 1
      %p117 = por %p115, %p116
      %p118 = scmp.ne.s32.totalorder %s109, %s110
      %p119 = scmp.eq.s32.totalorder %s22, 0
      %p120 = por %p118, %p119
      %p121 = scmp.ne.s32.totalorder %s109, %s110
      %p122 = scmp.eq.s32.totalorder %s23, 1
      %p123 = por %p121, %p122
      %p125 = scmp.ne.s32.totalorder %s110, %s124
      %p126 = scmp.eq.s32.totalorder %s23, 0
      %p127 = por %p125, %p126
      %s128 = ssub.s32 %s24, %s36
      %p129 = scmp.eq.s32.totalorder %s128, 0
      %s131 = sadd.s32 %s130, 1
      %s132 = scalar_select %p129, %s130, %s131
      %p135 = pneg %p129
      %p136 = scmp.eq.s32.totalorder %s17, 1
      %p137 = por %p135, %p136
      %p138 = scmp.ne.s32.totalorder %s130, %s133
      %p139 = scmp.eq.s32.totalorder %s17, 0
      %p140 = por %p138, %p139
      %p141 = scmp.ne.s32.totalorder %s130, %s133
      %p142 = scmp.eq.s32.totalorder %s22, 1
      %p143 = por %p141, %p142
      %p144 = scmp.ne.s32.totalorder %s133, %s134
      %p145 = scmp.eq.s32.totalorder %s22, 0
      %p146 = por %p144, %p145
      %p147 = scmp.ne.s32.totalorder %s133, %s134
      %p148 = scmp.eq.s32.totalorder %s23, 1
      %p149 = por %p147, %p148
      %p151 = scmp.ne.s32.totalorder %s134, %s150
      %p152 = scmp.eq.s32.totalorder %s23, 0
      %p153 = por %p151, %p152
      %p154 = scmp.le.s32.totalorder 1, %s17
      %p155 = scmp.lt.s32.totalorder %s17, 3
      %p156 = pnand %p154, %p155
      %p157 = pneg %p156
      // Predicated region
      $region9: #{tpu_custom_call.1} parent=5 // pred_check
        _
      $region10: #{tpu_custom_call.1} parent=5 // pred_check_branch
        %159 = sbr.rel (%p156) target = $region12
      $region11: #{tpu_custom_call.1} parent=5 // pred_region
        %s160 = ssub.s32 %s17, 1
        // Predicated region
        $region13: #{tpu_custom_call.1} parent=11 // pred_check
          %p161 = pneg %p78
        $region14: #{tpu_custom_call.1} parent=11 // pred_check_branch
          %163 = sbr.rel (%p161) target = $region16
        $region15: #{tpu_custom_call.1} parent=11 // pred_region
          %s165 = ssub.s32 1024, 1024
          %166 = vsyncadd [#allocation7], %s165
          %s167 = sshll.u32 [#allocation6], 4
          %s168 = int_to_ptr.vmem [resolvable:$true] %s167
          %173 = dma.hbm_to_vmem [thread:$0]  %s1, 1024, %s168, [#allocation7], 64, 64, 4
        $region16: #{tpu_custom_call.1} parent=11 // pred_fallthru
          _
        // Predicated region
        $region17: #{tpu_custom_call.1} parent=11 // pred_check
          %p174 = pneg %p99
        $region18: #{tpu_custom_call.1} parent=11 // pred_check_branch
          %176 = sbr.rel (%p174) target = $region20
        $region19: #{tpu_custom_call.1} parent=11 // pred_region
          %s178 = ssub.s32 1024, 1024
          %179 = vsyncadd [#allocation7], %s178
          %s180 = sshll.u32 [#allocation8], 4
          %s181 = int_to_ptr.vmem [resolvable:$true] %s180
          %186 = dma.hbm_to_vmem [thread:$0]  %s2, 1024, %s181, [#allocation7], 64, 64, 4
        $region20: #{tpu_custom_call.1} parent=11 // pred_fallthru
          _
        // Predicated region
        $region21: #{tpu_custom_call.1} parent=11 // pred_check
          %p187 = pneg %p120
        $region22: #{tpu_custom_call.1} parent=11 // pred_check_branch
          %189 = sbr.rel (%p187) target = $region24
        $region23: #{tpu_custom_call.1} parent=11 // pred_region
          _
        $region24: #{tpu_custom_call.1} parent=11 // pred_fallthru
          _
      $region12: #{tpu_custom_call.1} parent=5 // pred_fallthru
        _
      %p190 = scmp.lt.s32.totalorder %s17, 2
      // Predicated region
      $region25: #{tpu_custom_call.1} parent=5 // pred_check
        %p191 = pneg %p190
      $region26: #{tpu_custom_call.1} parent=5 // pred_check_branch
        %193 = sbr.rel (%p191) target = $region28
      $region27: #{tpu_custom_call.1} parent=5 // pred_region
        // Predicated region
        $region29: #{tpu_custom_call.1} parent=27 // pred_check
          %p194 = pneg %p51
        $region30: #{tpu_custom_call.1} parent=27 // pred_check_branch
          %196 = sbr.rel (%p194) target = $region32
        $region31: #{tpu_custom_call.1} parent=27 // pred_region
          %s197 = sand.u32 %s41, 1
          %s198 = scalar_lea.sflag [#allocation4], %s197
          %s199 = sand.u32 %s41, 1
          %s200 = smul.addr %s199, 16
          %s201 = scalar_lea.vmem [#allocation3], %s200
          %s202 = smul.u32 4, %s24
          %s204 = ssub.s32 256, 256
          %205 = vsyncadd %s198, %s204
          %s206 = sadd.s32 %s25, %s202
          %s207 = smul.addr %s206, 64
          %s208 = scalar_lea.hbm %s0, %s207
          %s209 = sshll.u32 %s201, 4
          %s210 = int_to_ptr.vmem [resolvable:$true] %s209
          %215 = dma.hbm_to_vmem [thread:$0]  %s208, 256, %s210, %s198, 64, 64, 4
        $region32: #{tpu_custom_call.1} parent=27 // pred_fallthru
          _
      $region28: #{tpu_custom_call.1} parent=5 // pred_fallthru
        _
      %p216 = scmp.le.s32.totalorder 1, %s17
      %p217 = scmp.lt.s32.totalorder %s17, 3
      %p218 = pnand %p216, %p217
      %p219 = pneg %p218
      // Predicated region
      $region33: #{tpu_custom_call.1} parent=5 // pred_check
        _
      $region34: #{tpu_custom_call.1} parent=5 // pred_check_branch
        %221 = sbr.rel (%p218) target = $region36
      $region35: #{tpu_custom_call.1} parent=5 // pred_region
        %s222 = ssub.s32 %s17, 1
        %s223 = sand.u32 %s44, 1
        %s224 = scalar_lea.sflag [#allocation4], %s223
        %s225 = sand.u32 %s44, 1
        %s226 = smul.addr %s225, 16
        %s227 = scalar_lea.vmem [#allocation3], %s226
        // Predicated region
        $region37: #{tpu_custom_call.1} parent=35 // pred_check
          %p228 = pneg %p57
        $region38: #{tpu_custom_call.1} parent=35 // pred_check_branch
          %230 = sbr.rel (%p228) target = $region40
        $region39: #{tpu_custom_call.1} parent=35 // pred_region
          %231 = dma.done %s224, 256
        $region40: #{tpu_custom_call.1} parent=35 // pred_fallthru
          _
        // Predicated region
        $region41: #{tpu_custom_call.1} parent=35 // pred_check
          %p232 = pneg %p78
        $region42: #{tpu_custom_call.1} parent=35 // pred_check_branch
          %234 = sbr.rel (%p232) target = $region44
        $region43: #{tpu_custom_call.1} parent=35 // pred_region
          %235 = dma.done [#allocation7], 1024
        $region44: #{tpu_custom_call.1} parent=35 // pred_fallthru
          _
        // Predicated region
        $region45: #{tpu_custom_call.1} parent=35 // pred_check
          %p236 = pneg %p99
        $region46: #{tpu_custom_call.1} parent=35 // pred_check_branch
          %238 = sbr.rel (%p236) target = $region48
        $region47: #{tpu_custom_call.1} parent=35 // pred_region
          %239 = dma.done [#allocation7], 1024
        $region48: #{tpu_custom_call.1} parent=35 // pred_fallthru
          _
        %s240 = sand.u32 %s44, 1
        %s241 = scalar_lea.sflag [#allocation4], %s240
        %s242 = sand.u32 %s44, 1
        %s243 = smul.addr %s242, 16
        %s244 = scalar_lea.vmem [#allocation3], %s243
        %p245 = pneg %p57
        %p246 = pneg %p54
        %p247 = pneg %p78
        %p248 = pneg %p75
        %p249 = pneg %p99
        %p250 = pneg %p96
        %p251 = pneg %p120
        %p252 = pneg %p117
        %p253 = pneg %p146
        %p254 = pneg %p143
        %s255 = sand.u32 %s133, 1
        %s256 = scalar_lea.sflag [#allocation5], %s255
        %s257 = sand.u32 %s133, 1
        %s258 = smul.addr %s257, 32
        %s259 = scalar_lea.vmem [#allocation9], %s258
        %s260 = smul.u32 4, %s26
        %s261 = smul.u32 4, %s26
        %p263 = scmp.eq.s32.totalorder %s27, 0
        // Predicated region
        $region49: #{tpu_custom_call.1} parent=35 // pred_check
          %p264 = pneg %p263
        $region50: #{tpu_custom_call.1} parent=35 // pred_check_branch
          %266 = sbr.rel (%p264) target = $region52
        $region51: #{tpu_custom_call.1} parent=35 // pred_region
          %267 = vst [vmem:[#allocation2] sm:$0xff] 0.0
          %268 = vst [vmem:[#allocation2 + $0x8] sm:$0xff] 0.0
          %269 = vst [vmem:[#allocation2 + $0x10] sm:$0xff] 0.0
          %270 = vst [vmem:[#allocation2 + $0x18] sm:$0xff] 0.0
        $region52: #{tpu_custom_call.1} parent=35 // pred_fallthru
          _
        %s271 = smul.u32 %s27, 128
        %s272 = sshra.s32 %s271, 3
        %s273 = sand.u32 %s271, 7
        %s274 = smul.addr %s272, 4
        %s275 = scalar_lea.vmem [#allocation6], %s274
        %v276 = vld [vmem:[%s275] sm:$0xf]
        %v277 = vld [vmem:[%s275 + $0x4] sm:$0xf]
        %v278 = vld [vmem:[%s275 + $0x8] sm:$0xf]
        %v279 = vld [vmem:[%s275 + $0xc] sm:$0xf]
        %v280 = vld [vmem:[%s275 + $0x10] sm:$0xf]
        %v281 = vld [vmem:[%s275 + $0x14] sm:$0xf]
        %v282 = vld [vmem:[%s275 + $0x18] sm:$0xf]
        %v283 = vld [vmem:[%s275 + $0x1c] sm:$0xf]
        %v284 = vld [vmem:[%s275 + $0x20] sm:$0xf]
        %v285 = vld [vmem:[%s275 + $0x24] sm:$0xf]
        %v286 = vld [vmem:[%s275 + $0x28] sm:$0xf]
        %v287 = vld [vmem:[%s275 + $0x2c] sm:$0xf]
        %v288 = vld [vmem:[%s275 + $0x30] sm:$0xf]
        %v289 = vld [vmem:[%s275 + $0x34] sm:$0xf]
        %v290 = vld [vmem:[%s275 + $0x38] sm:$0xf]
        %v291 = vld [vmem:[%s275 + $0x3c] sm:$0xf]
        %v292 = vld [vmem:[#allocation2] sm:$0xff]
        %v293 = vld [vmem:[#allocation2 + $0x8] sm:$0xff]
        %v294 = vld [vmem:[#allocation2 + $0x10] sm:$0xff]
        %v295 = vld [vmem:[#allocation2 + $0x18] sm:$0xff]
        %v296 = vld [vmem:[%s227] sm:$0xf]
        %v297 = vld [vmem:[%s227 + $0x4] sm:$0xf]
        %v298 = vld [vmem:[%s227 + $0x8] sm:$0xf]
        %v299 = vld [vmem:[%s227 + $0xc] sm:$0xf]
        %v304 = vunpack.c.l.b16 %v296
        %v305 = vunpack.c.l.b16 %v297
        %v306 = vunpack.c.l.b16 %v298
        %v307 = vunpack.c.l.b16 %v299
        %v308 = vpack.c.b16 %v305, %v304
        %v309 = vpack.c.b16 %v307, %v306
        %v328 = vunpack.c.l.b16 %v276
        %v329 = vunpack.c.l.b16 %v277
        %v330 = vunpack.c.l.b16 %v278
        %v331 = vunpack.c.l.b16 %v279
        %v332 = vunpack.c.l.b16 %v280
        %v333 = vunpack.c.l.b16 %v281
        %v334 = vunpack.c.l.b16 %v282
        %v335 = vunpack.c.l.b16 %v283
        %v336 = vunpack.c.l.b16 %v284
        %v337 = vunpack.c.l.b16 %v285
        %v338 = vunpack.c.l.b16 %v286
        %v339 = vunpack.c.l.b16 %v287
        %v340 = vunpack.c.l.b16 %v288
        %v341 = vunpack.c.l.b16 %v289
        %v342 = vunpack.c.l.b16 %v290
        %v343 = vunpack.c.l.b16 %v291
        %v344 = vpack.c.b16 %v329, %v328
        %v345 = vpack.c.b16 %v331, %v330
        %v346 = vpack.c.b16 %v333, %v332
        %v347 = vpack.c.b16 %v335, %v334
        %v348 = vpack.c.b16 %v337, %v336
        %v349 = vpack.c.b16 %v339, %v338
        %v350 = vpack.c.b16 %v341, %v340
        %v351 = vpack.c.b16 %v343, %v342
        %360 = vmatprep.subr.bf16.mxu0 0
        %361 = vmatpush1.bf16.msra.mxu0 %v344
        %362 = vmatprep.subr.bf16.mxu0 0
        %363 = vmatpush1.bf16.msra.mxu0 %v345
        %364 = vmatprep.subr.bf16.mxu0 0
        %365 = vmatpush1.bf16.msra.mxu0 %v346
        %366 = vmatprep.subr.bf16.mxu0 0
        %367 = vmatpush1.bf16.msra.mxu0 %v347
        %368 = vmatprep.subr.bf16.mxu0 0
        %369 = vmatpush1.bf16.msra.mxu0 %v348
        %370 = vmatprep.subr.bf16.mxu0 0
        %371 = vmatpush1.bf16.msra.mxu0 %v349
        %372 = vmatprep.subr.bf16.mxu0 0
        %373 = vmatpush1.bf16.msra.mxu0 %v350
        %374 = vmatprep.subr.bf16.mxu0 0
        %375 = vmatpush1.bf16.msra.mxu0 %v351
        %376 = vmatprep.subr.bf16.mxu0 0
        %377 = vmatpush1.bf16.msra.mxu0 0
        %378 = vmatprep.subr.bf16.mxu0 0
        %379 = vmatpush1.bf16.msra.mxu0 0
        %380 = vmatprep.subr.bf16.mxu0 0
        %381 = vmatpush1.bf16.msra.mxu0 0
        %382 = vmatprep.subr.bf16.mxu0 0
        %383 = vmatpush1.bf16.msra.mxu0 0
        %384 = vmatprep.subr.bf16.mxu0 0
        %385 = vmatpush1.bf16.msra.mxu0 0
        %386 = vmatprep.subr.bf16.mxu0 0
        %387 = vmatpush1.bf16.msra.mxu0 0
        %388 = vmatprep.subr.bf16.mxu0 0
        %389 = vmatpush1.bf16.msra.mxu0 0
        %390 = vmatprep.subr.bf16.mxu0 0
        %391 = vmatpush1.bf16.msra.mxu0 0
        %392 = vmatprep.mubr.bf16.mxu0 0
        %393 = vmatmul.mubr.bf16.gmra.mrb[0].mxu0 %v308
        %v394 = vpop.f32.mrb[0].mxu0
        %v395 = vadd.f32 0.0, %v394
        %v396 = vpop.f32.mrb[0].mxu0
        %v397 = vpop.f32.mrb[0].mxu0
        %v398 = vadd.f32 0.0, %v397
        %v399 = vpop.f32.mrb[0].mxu0
        %400 = vmatprep.mubr.bf16.mxu0 0
        %401 = vmatmul.mubr.bf16.gmra.mrb[0].mxu0 %v309
        %v402 = vpop.f32.mrb[0].mxu0
        %v403 = vadd.f32 0.0, %v402
        %v404 = vpop.f32.mrb[0].mxu0
        %v405 = vpop.f32.mrb[0].mxu0
        %v406 = vadd.f32 0.0, %v405
        %v407 = vpop.f32.mrb[0].mxu0
        %408 = vdwg.mxu0
        %v409 = vadd.f32 %v292, %v395
        %v410 = vadd.f32 %v293, %v398
        %v411 = vadd.f32 %v294, %v403
        %v412 = vadd.f32 %v295, %v406
        %413 = vst [vmem:[#allocation2] sm:$0xff] %v409
        %414 = vst [vmem:[#allocation2 + $0x8] sm:$0xff] %v410
        %415 = vst [vmem:[#allocation2 + $0x10] sm:$0xff] %v411
        %416 = vst [vmem:[#allocation2 + $0x18] sm:$0xff] %v412
        // Predicated region
        $region53: #{tpu_custom_call.1} parent=35 // pred_check
          %p417 = pneg %p263
        $region54: #{tpu_custom_call.1} parent=35 // pred_check_branch
          %419 = sbr.rel (%p417) target = $region56
        $region55: #{tpu_custom_call.1} parent=35 // pred_region
          %v420 = vld [vmem:[#allocation2] sm:$0xff]
          %v421 = vld [vmem:[#allocation2 + $0x8] sm:$0xff]
          %v422 = vld [vmem:[#allocation2 + $0x10] sm:$0xff]
          %v423 = vld [vmem:[#allocation2 + $0x18] sm:$0xff]
          %v424 = vpack.c.bf16 %v421, %v420
          %v425 = vpack.c.bf16 %v423, %v422
          %v426 = vld [vmem:[#allocation8] sm:$0xf]
          %v427 = vld [vmem:[#allocation8 + $0x4] sm:$0xf]
          %v428 = vld [vmem:[#allocation8 + $0x8] sm:$0xf]
          %v429 = vld [vmem:[#allocation8 + $0xc] sm:$0xf]
          %v430 = vld [vmem:[#allocation8 + $0x10] sm:$0xf]
          %v431 = vld [vmem:[#allocation8 + $0x14] sm:$0xf]
          %v432 = vld [vmem:[#allocation8 + $0x18] sm:$0xf]
          %v433 = vld [vmem:[#allocation8 + $0x1c] sm:$0xf]
          %v434 = vld [vmem:[#allocation8 + $0x20] sm:$0xf]
          %v435 = vld [vmem:[#allocation8 + $0x24] sm:$0xf]
          %v436 = vld [vmem:[#allocation8 + $0x28] sm:$0xf]
          %v437 = vld [vmem:[#allocation8 + $0x2c] sm:$0xf]
          %v438 = vld [vmem:[#allocation8 + $0x30] sm:$0xf]
          %v439 = vld [vmem:[#allocation8 + $0x34] sm:$0xf]
          %v440 = vld [vmem:[#allocation8 + $0x38] sm:$0xf]
          %v441 = vld [vmem:[#allocation8 + $0x3c] sm:$0xf]
          %v442 = vld [vmem:[%s3] sm:$0x1]
          %v444 = vlaneseq
          %v445 = vshrl.u32 %v444, 7
          %v446 = vsub.s32 0, %v445
          %v447 = vrot.slane %v442, %v446
          %v465 = vunpack.c.l.b16 %v426
          %v466 = vunpack.c.l.b16 %v427
          %v467 = vunpack.c.l.b16 %v428
          %v468 = vunpack.c.l.b16 %v429
          %v469 = vunpack.c.l.b16 %v430
          %v470 = vunpack.c.l.b16 %v431
          %v471 = vunpack.c.l.b16 %v432
          %v472 = vunpack.c.l.b16 %v433
          %v473 = vunpack.c.l.b16 %v434
          %v474 = vunpack.c.l.b16 %v435
          %v475 = vunpack.c.l.b16 %v436
          %v476 = vunpack.c.l.b16 %v437
          %v477 = vunpack.c.l.b16 %v438
          %v478 = vunpack.c.l.b16 %v439
          %v479 = vunpack.c.l.b16 %v440
          %v480 = vunpack.c.l.b16 %v441
          %v481 = vpack.c.b16 %v466, %v465
          %v482 = vpack.c.b16 %v468, %v467
          %v483 = vpack.c.b16 %v470, %v469
          %v484 = vpack.c.b16 %v472, %v471
          %v485 = vpack.c.b16 %v474, %v473
          %v486 = vpack.c.b16 %v476, %v475
          %v487 = vpack.c.b16 %v478, %v477
          %v488 = vpack.c.b16 %v480, %v479
          %497 = vmatprep.subr.bf16.mxu0 0
          %498 = vmatpush1.bf16.msra.mxu0 %v481
          %499 = vmatprep.subr.bf16.mxu0 0
          %500 = vmatpush1.bf16.msra.mxu0 %v482
          %501 = vmatprep.subr.bf16.mxu0 0
          %502 = vmatpush1.bf16.msra.mxu0 %v483
          %503 = vmatprep.subr.bf16.mxu0 0
          %504 = vmatpush1.bf16.msra.mxu0 %v484
          %505 = vmatprep.subr.bf16.mxu0 0
          %506 = vmatpush1.bf16.msra.mxu0 %v485
          %507 = vmatprep.subr.bf16.mxu0 0
          %508 = vmatpush1.bf16.msra.mxu0 %v486
          %509 = vmatprep.subr.bf16.mxu0 0
          %510 = vmatpush1.bf16.msra.mxu0 %v487
          %511 = vmatprep.subr.bf16.mxu0 0
          %512 = vmatpush1.bf16.msra.mxu0 %v488
          %513 = vmatprep.subr.bf16.mxu0 0
          %514 = vmatpush1.bf16.msra.mxu0 0
          %515 = vmatprep.subr.bf16.mxu0 0
          %516 = vmatpush1.bf16.msra.mxu0 0
          %517 = vmatprep.subr.bf16.mxu0 0
          %518 = vmatpush1.bf16.msra.mxu0 0
          %519 = vmatprep.subr.bf16.mxu0 0
          %520 = vmatpush1.bf16.msra.mxu0 0
          %521 = vmatprep.subr.bf16.mxu0 0
          %522 = vmatpush1.bf16.msra.mxu0 0
          %523 = vmatprep.subr.bf16.mxu0 0
          %524 = vmatpush1.bf16.msra.mxu0 0
          %525 = vmatprep.subr.bf16.mxu0 0
          %526 = vmatpush1.bf16.msra.mxu0 0
          %527 = vmatprep.subr.bf16.mxu0 0
          %528 = vmatpush1.bf16.msra.mxu0 0
          %529 = vmatprep.mubr.bf16.mxu0 0
          %530 = vmatmul.mubr.bf16.gmra.mrb[0].mxu0 %v424
          %v531 = vpop.f32.mrb[0].mxu0
          %v532 = vadd.f32 %v447, %v531
          %v533 = vpop.f32.mrb[0].mxu0
          %v534 = vpop.f32.mrb[0].mxu0
          %v535 = vadd.f32 %v447, %v534
          %v536 = vpop.f32.mrb[0].mxu0
          %537 = vmatprep.mubr.bf16.mxu0 0
          %538 = vmatmul.mubr.bf16.gmra.mrb[0].mxu0 %v425
          %v539 = vpop.f32.mrb[0].mxu0
          %v540 = vadd.f32 %v447, %v539
          %v541 = vpop.f32.mrb[0].mxu0
          %v542 = vpop.f32.mrb[0].mxu0
          %v543 = vadd.f32 %v447, %v542
          %v544 = vpop.f32.mrb[0].mxu0
          %545 = vdwg.mxu0
          %546 = vst [vmem:[%s259] sm:$0xff] %v532
          %547 = vst [vmem:[%s259 + $0x8] sm:$0xff] %v535
          %548 = vst [vmem:[%s259 + $0x10] sm:$0xff] %v540
          %549 = vst [vmem:[%s259 + $0x18] sm:$0xff] %v543
        $region56: #{tpu_custom_call.1} parent=35 // pred_fallthru
          _
        %s550 = sand.u32 %s133, 1
        %s551 = scalar_lea.sflag [#allocation5], %s550
        %s552 = sand.u32 %s133, 1
        %s553 = smul.addr %s552, 32
        %s554 = scalar_lea.vmem [#allocation9], %s553
        // Predicated region
        $region57: #{tpu_custom_call.1} parent=35 // pred_check
          %p555 = pneg %p143
        $region58: #{tpu_custom_call.1} parent=35 // pred_check_branch
          %557 = sbr.rel (%p555) target = $region60
        $region59: #{tpu_custom_call.1} parent=35 // pred_region
          %s558 = smul.u32 4, %s26
          %s560 = ssub.s32 512, 512
          %561 = vsyncadd %s551, %s560
          %s562 = smul.addr %s558, 128
          %s563 = scalar_lea.hbm %s4, %s562
          %s564 = sshll.u32 %s554, 4
          %s565 = int_to_ptr.vmem [resolvable:$true] %s564
          %570 = dma.vmem_to_hbm [thread:$0]  %s565, 512, %s563, %s551, 128, 128, 8
        $region60: #{tpu_custom_call.1} parent=35 // pred_fallthru
          _
      $region36: #{tpu_custom_call.1} parent=5 // pred_fallthru
        _
      %p571 = scmp.le.s32.totalorder 2, %s17
      // Predicated region
      $region61: #{tpu_custom_call.1} parent=5 // pred_check
        %p572 = pneg %p571
      $region62: #{tpu_custom_call.1} parent=5 // pred_check_branch
        %574 = sbr.rel (%p572) target = $region64
      $region63: #{tpu_custom_call.1} parent=5 // pred_region
        %s575 = ssub.s32 %s17, 2
        // Predicated region
        $region65: #{tpu_custom_call.1} parent=63 // pred_check
          %p576 = pneg %p149
        $region66: #{tpu_custom_call.1} parent=63 // pred_check_branch
          %578 = sbr.rel (%p576) target = $region68
        $region67: #{tpu_custom_call.1} parent=63 // pred_region
          %s579 = sand.u32 %s134, 1
          %s580 = scalar_lea.sflag [#allocation5], %s579
          %s581 = sand.u32 %s134, 1
          %s582 = smul.addr %s581, 32
          %s583 = scalar_lea.vmem [#allocation9], %s582
          %584 = dma.done %s580, 512
        $region68: #{tpu_custom_call.1} parent=63 // pred_fallthru
          _
      $region64: #{tpu_custom_call.1} parent=5 // pred_fallthru
        _
    $region6: #{tpu_custom_call.1} parent=1 // loop_footer
      %s21 = sadd.s32 1, %s17
    $region7: #{tpu_custom_call.1} parent=1 // loop_footer_branch
      %16 = sbr.rel target = $region3
    $region8: #{tpu_custom_call.1} parent=1 // loop_exit
      _
    %585 = vsyncpa [#allocation4], 1
    %s586 = scalar_lea.sflag [#allocation4], 1
    %587 = vsyncpa %s586, 1
    %588 = vsyncpa [#allocation7], 1
    %589 = vsyncpa [#allocation5], 1
    %s590 = scalar_lea.sflag [#allocation5], 1
    %591 = vsyncpa %s590, 1

</llo_original>
